<compile_context>
chip_gen: v6e
topology: v6e:2x2x1
jax: 0.10.0
libtpu: 0.0.40
codegen_flags: <defaults>
</compile_context>

<pallas_src>
import functools

import jax
import jax.numpy as jnp
from jax import lax
from jax.experimental import pallas as pl
from jax.experimental.pallas import tpu as pltpu


# --------------------------------------------------------------------------- #
# Kernel
# --------------------------------------------------------------------------- #
def _mlp_kernel(x_ref, w1_ref, b1_ref, w2_ref, b2_ref, o_ref):
    # linear1 with batch on lanes: contract the `in` axis of both operands.
    #   (hidden, in) . (TB, in) -> (hidden, TB)   [MXU, f32 accumulate]
    h = lax.dot_general(
        w1_ref[...], x_ref[...],
        dimension_numbers=(((1,), (1,)), ((), ())),
        preferred_element_type=jnp.float32,
    )
    # bias (hidden, 1) broadcasts across the lane (batch) axis; ReLU on the VPU.
    h = jnp.maximum(h + b1_ref[...], 0.0)
    # linear2 (out_features == 1) as a sublane reduction instead of an N=1 MXU
    # matmul:  sum_h h[h, b] * w2[h]  ->  (1, TB), lane-dense.
    z = jnp.sum(h * w2_ref[...], axis=0, keepdims=True) + b2_ref[0]
    # Exact sigmoid: exp on the EUP, one VPU divide (free in a mem-bound kernel).
    o_ref[...] = (1.0 / (1.0 + jnp.exp(-z))).astype(o_ref.dtype)


# --------------------------------------------------------------------------- #
# Parameter prep (one-time, hoisted out of the forward pass)
# --------------------------------------------------------------------------- #
def prepare_params(w1, b1, w2, b2, *, compute_dtype=jnp.float32):
    """Convert PyTorch nn.Linear layout to the kernel layout.

    w1: (hidden, in) -> unchanged (optionally cast to compute_dtype, e.g. bf16)
    b1: (hidden,)    -> (hidden, 1)  (f32; broadcasts over the lane/batch axis)
    w2: (1, hidden)  -> (hidden, 1)  (f32)
    b2: (1,)         -> (1,) f32     (lives in SMEM)
    """
    hidden = w1.shape[0]
    return (
        jnp.asarray(w1, compute_dtype),
        jnp.asarray(b1, jnp.float32).reshape(hidden, 1),
        jnp.asarray(w2, jnp.float32).reshape(hidden, 1),
        jnp.asarray(b2, jnp.float32).reshape(1),
    )


# --------------------------------------------------------------------------- #
# Tile / VMEM sizing helpers
# --------------------------------------------------------------------------- #
def _round_up(x, m):
    return ((x + m - 1) // m) * m


def _round_down(x, m):
    return (x // m) * m


def _choose_batch_tile(B, batch_tile, in_features, hidden, itemsize):
    """Pick a batch tile that amortizes per-step overhead, keeps >=2-8 grid
    steps when B is large (megacore / pipelining), satisfies the (8,128)
    constraint, and stays inside a conservative VMEM budget."""
    # Aim for up to 8 grid steps, but never below 4096 rows (~0.5 MiB of x at
    # in=32 f32) unless the caller explicitly asked for a smaller tile.
    auto = max(_round_up(pl.cdiv(B, 8), 128), 4096)
    tb = min(batch_tile, auto)

    # VMEM budget: double-buffered x tile (last dim lane-pads to 128) plus the
    # (hidden, tb) f32 intermediate, kept under ~24 MiB (safe on v5e/v6e/v7x).
    lane_in = _round_up(in_features, 128)
    per_row = 2 * lane_in * itemsize + 2 * _round_up(hidden, 8) * 4
    vmem_cap_rows = max(128, _round_down((24 << 20) // per_row, 128))
    tb = min(tb, vmem_cap_rows)

    if tb >= B:
        return B  # single step; full-array block is exempt from (8,128) rule
    # Multiple grid steps: multiple of 128 -> sublane-aligned x block and a
    # lane-dense (unmasked) output store.
    return max(128, _round_down(tb, 128))


def _vmem_limit_bytes(tb, in_features, hidden, itemsize):
    lane_in = _round_up(in_features, 128)
    x_bytes = 2 * _round_up(tb, 8) * lane_in * itemsize          # x double-buffer
    h_bytes = 2 * _round_up(hidden, 8) * _round_up(tb, 128) * 4  # intermediate + slack
    w_bytes = 2 * (hidden * lane_in + 2 * _round_up(hidden, 8) * 128) * 4
    o_bytes = 2 * 8 * _round_up(tb, 128) * 4
    est = x_bytes + h_bytes + w_bytes + o_bytes + (8 << 20)      # headroom
    return int(min(_round_up(est, 1 << 20), 60 << 20))           # < v7x 64 MiB physical


# --------------------------------------------------------------------------- #
# Forward pass
# --------------------------------------------------------------------------- #
@functools.partial(jax.jit, static_argnames=("batch_tile",))
def neuralnet1_forward(x, params, *, batch_tile=16384):
    """x: (B, in). params: output of prepare_params. Returns (B, 1) probabilities."""
    w1, b1_col, w2_col, b2 = params
    B, in_features = x.shape
    hidden = w1.shape[0]

    # bf16 compute path: ideally the producer hands x over already in bf16 so
    # the cast here is a no-op; otherwise it is a single extra elementwise pass.
    if x.dtype != w1.dtype:
        x = x.astype(w1.dtype)
    itemsize = jnp.dtype(w1.dtype).itemsize

    tb = _choose_batch_tile(B, batch_tile, in_features, hidden, itemsize)
    grid = (pl.cdiv(B, tb),)

    cost = pl.CostEstimate(
        flops=2 * B * in_features * hidden + 4 * B * hidden,
        transcendentals=B,
        bytes_accessed=B * in_features * itemsize + B * 4
        + (hidden * in_features + 2 * hidden + 1) * 4,
    )

    out = pl.pallas_call(
        _mlp_kernel,
        out_shape=jax.ShapeDtypeStruct((1, B), jnp.float32),
        grid_spec=pltpu.PrefetchScalarGridSpec(
            num_scalar_prefetch=0,
            grid=grid,
            in_specs=[
                pl.BlockSpec((tb, in_features), lambda i: (i, 0)),      # x batch tile
                pl.BlockSpec((hidden, in_features), lambda i: (0, 0)),  # w1 (resident)
                pl.BlockSpec((hidden, 1), lambda i: (0, 0)),            # b1 column
                pl.BlockSpec((hidden, 1), lambda i: (0, 0)),            # w2 column
                pl.BlockSpec(memory_space=pltpu.MemorySpace.SMEM),      # b2 scalar
            ],
            out_specs=pl.BlockSpec((1, tb), lambda i: (0, i)),          # lane-dense out
        ),
        compiler_params=pltpu.CompilerParams(
            # Batch axis is independent -> shards across v7x's 2 TensorCores and
            # pipelines the x DMA at large B on every generation.
            dimension_semantics=("parallel",),
            # Explicit limit: larger tiles exceed v5e's 16 MiB scoped default;
            # stays well under v7x's 64 MiB physical VMEM.
            vmem_limit_bytes=_vmem_limit_bytes(tb, in_features, hidden, itemsize),
        ),
        cost_estimate=cost,
    )(x, w1, b1_col, w2_col, b2)

    # Kernel emits (1, B) with batch on lanes; (1,B)->(B,1) is a free reshape.
    return out.reshape(B, 1)


# --------------------------------------------------------------------------- #
# Reference init / test
# --------------------------------------------------------------------------- #
def init_params(key, input_size, hidden_size):
    """Deterministic init matching nn.Linear's default U(-1/sqrt(fan_in), 1/sqrt(fan_in))."""
    k1, k2, k3, k4 = jax.random.split(key, 4)
    bound1 = 1.0 / (input_size ** 0.5)
    bound2 = 1.0 / (hidden_size ** 0.5)
    w1 = jax.random.uniform(k1, (hidden_size, input_size), jnp.float32, -bound1, bound1)
    b1 = jax.random.uniform(k2, (hidden_size,), jnp.float32, -bound1, bound1)
    w2 = jax.random.uniform(k3, (1, hidden_size), jnp.float32, -bound2, bound2)
    b2 = jax.random.uniform(k4, (1,), jnp.float32, -bound2, bound2)
    return w1, b1, w2, b2


def _reference(x, w1, b1, w2, b2):
    return jax.nn.sigmoid(jnp.maximum(x @ w1.T + b1, 0.0) @ w2.T + b2)


if __name__ == "__main__":
    key = jax.random.PRNGKey(0)
    input_size, hidden_size = 32, 32

    kx1, kx2, kp = jax.random.split(key, 3)
    w1, b1, w2, b2 = init_params(kp, input_size, hidden_size)
    params_f32 = prepare_params(w1, b1, w2, b2)  # one-time layout prep

    # --- Test 1: tiny batch, single grid step, fp32 exact path ---------------
    x1 = jax.random.normal(kx1, (8, input_size), dtype=jnp.float32)
    y1 = jax.block_until_ready(neuralnet1_forward(x1, params_f32))
    ref1 = _reference(x1, w1, b1, w2, b2)
    assert y1.shape == (8, 1)
    assert jnp.allclose(y1, ref1, atol=1e-5, rtol=1e-5), "fp32 single-tile mismatch"

    # --- Test 2: multi-step grid with a partial last tile, fp32 --------------
    B2 = 333
    x2 = jax.random.normal(kx2, (B2, input_size), dtype=jnp.float32)
    y2 = jax.block_until_ready(neuralnet1_forward(x2, params_f32, batch_tile=128))
    ref2 = _reference(x2, w1, b1, w2, b2)
    assert y2.shape == (B2, 1)
    assert jnp.allclose(y2, ref2, atol=1e-5, rtol=1e-5), "fp32 multi-tile mismatch"

    # --- Test 3: bf16 compute path (halves HBM bytes; f32 accumulate) --------
    params_bf16 = prepare_params(w1, b1, w2, b2, compute_dtype=jnp.bfloat16)
    y3 = jax.block_until_ready(neuralnet1_forward(x2, params_bf16, batch_tile=128))
    assert y3.shape == (B2, 1)
    assert jnp.allclose(y3, ref2, atol=3e-2), "bf16 path mismatch"

    print("KERNEL_OK")
</pallas_src>

<mosaic_0001>
module attributes {stable_mosaic.version = 11 : i64} {
  func.func @_mlp_kernel(%arg0: i32, %arg1: memref<8x32xf32, #tpu.memory_space<vmem>>, %arg2: memref<32x32xf32, #tpu.memory_space<vmem>>, %arg3: memref<32x1xf32, #tpu.memory_space<vmem>>, %arg4: memref<32x1xf32, #tpu.memory_space<vmem>>, %arg5: memref<1xf32, #tpu.memory_space<smem>>, %arg6: memref<1x8xf32, #tpu.memory_space<vmem>>) attributes {dimension_semantics = [#tpu.dimension_semantics<parallel>], iteration_bounds = array<i64: 1>, scalar_prefetch = 0 : i64, scratch_operands = 0 : i64, tpu.core_type = #tpu.core_type<tc>, window_params = [{transform_indices = @transform_0, window_bounds = array<i64: 8, 32>}, {pipeline_mode = #tpu.pipeline_mode<synchronous>, transform_indices = @transform_1, window_bounds = array<i64: 32, 32>}, {pipeline_mode = #tpu.pipeline_mode<synchronous>, transform_indices = @transform_2, window_bounds = array<i64: 32, 1>}, {pipeline_mode = #tpu.pipeline_mode<synchronous>, transform_indices = @transform_3, window_bounds = array<i64: 32, 1>}, {transform_indices = @transform_4, window_bounds = array<i64: 1>}, {transform_indices = @transform_5, window_bounds = array<i64: 1, 8>}]} {
    %c0 = arith.constant 0 : index
    %c0_0 = arith.constant 0 : index
    %0 = vector.load %arg2[%c0, %c0_0] : memref<32x32xf32, #tpu.memory_space<vmem>>, vector<32x32xf32>
    %c0_1 = arith.constant 0 : index
    %c0_2 = arith.constant 0 : index
    %1 = vector.load %arg1[%c0_1, %c0_2] : memref<8x32xf32, #tpu.memory_space<vmem>>, vector<8x32xf32>
    %cst = arith.constant dense<0.000000e+00> : vector<32x8xf32>
    %2 = tpu.matmul %0, %1, %cst {dimension_numbers = #tpu.dot_dimension_numbers<[1], [1], [0], [0], [0, 0, 1, 0], [], []>} : vector<32x32xf32>, vector<8x32xf32>, vector<32x8xf32> -> vector<32x8xf32>
    %c0_3 = arith.constant 0 : index
    %c0_4 = arith.constant 0 : index
    %3 = vector.load %arg3[%c0_3, %c0_4] : memref<32x1xf32, #tpu.memory_space<vmem>>, vector<32x1xf32>
    %4 = vector.broadcast %3 : vector<32x1xf32> to vector<32x8xf32>
    %5 = arith.addf %2, %4 : vector<32x8xf32>
    %cst_5 = arith.constant 0.000000e+00 : f32
    %6 = vector.broadcast %cst_5 : f32 to vector<32x8xf32>
    %7 = arith.maximumf %5, %6 : vector<32x8xf32>
    %c0_6 = arith.constant 0 : index
    %c0_7 = arith.constant 0 : index
    %8 = vector.load %arg4[%c0_6, %c0_7] : memref<32x1xf32, #tpu.memory_space<vmem>>, vector<32x1xf32>
    %9 = vector.broadcast %8 : vector<32x1xf32> to vector<32x8xf32>
    %10 = arith.mulf %7, %9 : vector<32x8xf32>
    %cst_8 = arith.constant dense<0.000000e+00> : vector<8xf32>
    %11 = vector.multi_reduction <add>, %10, %cst_8 [0] : vector<32x8xf32> to vector<8xf32>
    %12 = vector.shape_cast %11 : vector<8xf32> to vector<1x8xf32>
    %c0_9 = arith.constant 0 : index
    %13 = memref.load %arg5[%c0_9] : memref<1xf32, #tpu.memory_space<smem>>
    %14 = vector.broadcast %13 : f32 to vector<1x8xf32>
    %15 = arith.addf %12, %14 : vector<1x8xf32>
    %cst_10 = arith.constant 0.000000e+00 : f32
    %16 = vector.broadcast %cst_10 : f32 to vector<1x8xf32>
    %17 = arith.subf %16, %15 : vector<1x8xf32>
    %18 = math.exp %17 : vector<1x8xf32>
    %cst_11 = arith.constant 1.000000e+00 : f32
    %19 = vector.broadcast %cst_11 : f32 to vector<1x8xf32>
    %20 = arith.addf %19, %18 : vector<1x8xf32>
    %cst_12 = arith.constant 1.000000e+00 : f32
    %21 = vector.broadcast %cst_12 : f32 to vector<1x8xf32>
    %22 = arith.divf %21, %20 : vector<1x8xf32>
    %c0_13 = arith.constant 0 : index
    %c0_14 = arith.constant 0 : index
    %23 = vector.load %arg6[%c0_13, %c0_14] : memref<1x8xf32, #tpu.memory_space<vmem>>, vector<1x8xf32>
    tpu.vector_store %arg6[%c0_13, %c0_14], %22 {strides = array<i32>} : memref<1x8xf32, #tpu.memory_space<vmem>>, vector<1x8xf32>,
    return
  }
  func.func @transform_0(%arg0: i32) -> (i32, i32) {
    %c0_i32 = arith.constant 0 : i32
    %c0_i32_0 = arith.constant 0 : i32
    return %arg0, %c0_i32 : i32, i32
  }
  func.func @transform_1(%arg0: i32) -> (i32, i32) {
    %c0_i32 = arith.constant 0 : i32
    %c0_i32_0 = arith.constant 0 : i32
    %c0_i32_1 = arith.constant 0 : i32
    return %c0_i32, %c0_i32_0 : i32, i32
  }
  func.func @transform_2(%arg0: i32) -> (i32, i32) {
    %c0_i32 = arith.constant 0 : i32
    %c0_i32_0 = arith.constant 0 : i32
    %c0_i32_1 = arith.constant 0 : i32
    return %c0_i32, %c0_i32_0 : i32, i32
  }
  func.func @transform_3(%arg0: i32) -> (i32, i32) {
    %c0_i32 = arith.constant 0 : i32
    %c0_i32_0 = arith.constant 0 : i32
    %c0_i32_1 = arith.constant 0 : i32
    return %c0_i32, %c0_i32_0 : i32, i32
  }
  func.func @transform_4(%arg0: i32) -> i32 {
    %c0_i32 = arith.constant 0 : i32
    %c0_i32_0 = arith.constant 0 : i32
    return %c0_i32 : i32
  }
  func.func @transform_5(%arg0: i32) -> (i32, i32) {
    %c0_i32 = arith.constant 0 : i32
    %c0_i32_0 = arith.constant 0 : i32
    return %c0_i32, %arg0 : i32, i32
  }
}

</mosaic_0001>

<llo_original>
// kernel: neuralnet1_forward.1
$region0: #{neuralnet1_forward.1}
  #allocation0 [shape = 'u32[]', space=smem, size = 0x4, offset = 0x4, fixed_abs, tag = 'smem constant byte address 0x4 - core index']
  #allocation1 [shape = 'u32[144,128]{1,0:T(1,128)}', space=vmem, size = 0x12000, scoped, tag = 'internal scratch']
  #allocation2 [shape = 'f32[1]{0:T(128)S(6)}', space=smem, size = 0x200, scoped, tag = 'scoped memory for neuralnet1_forward.1']
  %s0 = inlined_call_operand.vmem [shape: f32[8,32], index: 0, kind: input, shape index: {}]
  %s1 = inlined_call_operand.vmem [shape: f32[32,32], index: 1, kind: input, shape index: {}]
  %s2 = inlined_call_operand.vmem [shape: f32[32,1], index: 2, kind: input, shape index: {}]
  %s3 = inlined_call_operand.vmem [shape: f32[32,1], index: 3, kind: input, shape index: {}]
  %s4 = inlined_call_operand.<no memory space> [shape: f32[1], index: 4, kind: input, shape index: {}]
  %s5 = inlined_call_operand.hbm [shape: f32[1,8], index: 5, kind: output, shape index: {}]
  %s6 = sld [smem:[#allocation0]]
  $region30: #{neuralnet1_forward.1} parent=0
    _
  %s8 = ssub.s32 1, %s6
  %s9 = scalar_select 0, %s8, %s6
  %10 = sst [smem:[#allocation2]] %s4
  $region1: #{neuralnet1_forward.1} parent=0
    #allocation3 [shape = 'u8[512]{0}', space=vmem, size = 0x400, scoped, tag = 'output window, operand 0, single buffered']
    #allocation4 [shape = 's32[1]{0}', space=sflag, size = 0x4, scoped, tag = 'scoped memory for neuralnet1_forward.1']
    %11 = vsyncpa [#allocation4], 0
    // Predicated region
    $region2: #{neuralnet1_forward.1} parent=1 // pred_check
      _
    $region3: #{neuralnet1_forward.1} parent=1 // pred_check_branch
      %13 = sbr.rel (0) target = $region5
    $region4: #{neuralnet1_forward.1} parent=1 // pred_region
      _
    $region5: #{neuralnet1_forward.1} parent=1 // pred_fallthru
      _
    // Predicated region
    $region6: #{neuralnet1_forward.1} parent=1 // pred_check
      _
    $region7: #{neuralnet1_forward.1} parent=1 // pred_check_branch
      %15 = sbr.rel (0) target = $region9
    $region8: #{neuralnet1_forward.1} parent=1 // pred_region
      _
    $region9: #{neuralnet1_forward.1} parent=1 // pred_fallthru
      _
    // Predicated region
    $region10: #{neuralnet1_forward.1} parent=1 // pred_check
      _
    $region11: #{neuralnet1_forward.1} parent=1 // pred_check_branch
      %17 = sbr.rel (0) target = $region13
    $region12: #{neuralnet1_forward.1} parent=1 // pred_region
      _
    $region13: #{neuralnet1_forward.1} parent=1 // pred_fallthru
      _
    // Predicated region
    $region14: #{neuralnet1_forward.1} parent=1 // pred_check
      _
    $region15: #{neuralnet1_forward.1} parent=1 // pred_check_branch
      %19 = sbr.rel (0) target = $region17
    $region16: #{neuralnet1_forward.1} parent=1 // pred_region
      _
    $region17: #{neuralnet1_forward.1} parent=1 // pred_fallthru
      _
    // Predicated region
    $region18: #{neuralnet1_forward.1} parent=1 // pred_check
      _
    $region19: #{neuralnet1_forward.1} parent=1 // pred_check_branch
      %21 = sbr.rel (0) target = $region21
    $region20: #{neuralnet1_forward.1} parent=1 // pred_region
      _
    $region21: #{neuralnet1_forward.1} parent=1 // pred_fallthru
      _
    %v22 = vld [vmem:[%s1] sm:$0xff]
    %v23 = vld [vmem:[%s1 + $0x8] sm:$0xff]
    %v24 = vld [vmem:[%s1 + $0x10] sm:$0xff]
    %v25 = vld [vmem:[%s1 + $0x18] sm:$0xff]
    %v26 = vld [vmem:[%s0] sm:$0xff]
    %v27 = vld [vmem:[%s2] sm:$0xff]
    %v28 = vld [vmem:[%s2 + $0x8] sm:$0xff]
    %v29 = vld [vmem:[%s2 + $0x10] sm:$0xff]
    %v30 = vld [vmem:[%s2 + $0x18] sm:$0xff]
    %32 = vset.pattern.permute.xlu0 0
    %33 = vperm.xlu0 %32, %v27
    %v34 = vpop.permute.xlu0 %33
    %37 = vset.pattern.permute.xlu0 0
    %38 = vperm.xlu0 %37, %v28
    %v39 = vpop.permute.xlu0 %38
    %42 = vset.pattern.permute.xlu0 0
    %43 = vperm.xlu0 %42, %v29
    %v44 = vpop.permute.xlu0 %43
    %47 = vset.pattern.permute.xlu0 0
    %48 = vperm.xlu0 %47, %v30
    %v49 = vpop.permute.xlu0 %48
    %vm51 = vcmask 261120
    %v53 = vsel %vm51, %v22, 0
    %v56 = vsel %vm51, %v23, 0
    %v59 = vsel %vm51, %v24, 0
    %v62 = vsel %vm51, %v25, 0
    %v65 = vsel %vm51, %v26, 0
    %67 = vmatprep.subr.mxu0 0.0
    %68 = vmatpush1.xpose.msra.mxu0 0.0
    %69 = vmatprep.subr.mxu0 0.0
    %70 = vmatpush1.xpose.msra.mxu0 0.0
    %71 = vmatprep.subr.mxu0 0.0
    %72 = vmatpush1.xpose.msra.mxu0 0.0
    %73 = vmatprep.subr.mxu0 0.0
    %74 = vmatpush1.xpose.msra.mxu0 0.0
    %75 = vmatprep.subr.mxu0 0.0
    %76 = vmatpush1.xpose.msra.mxu0 0.0
    %77 = vmatprep.subr.mxu0 0.0
    %78 = vmatpush1.xpose.msra.mxu0 0.0
    %79 = vmatprep.subr.mxu0 0.0
    %80 = vmatpush1.xpose.msra.mxu0 0.0
    %81 = vmatprep.subr.mxu0 0.0
    %82 = vmatpush1.xpose.msra.mxu0 0.0
    %83 = vmatprep.subr.mxu0 0.0
    %84 = vmatpush1.xpose.msra.mxu0 0.0
    %85 = vmatprep.subr.mxu0 0.0
    %86 = vmatpush1.xpose.msra.mxu0 0.0
    %87 = vmatprep.subr.mxu0 0.0
    %88 = vmatpush1.xpose.msra.mxu0 0.0
    %89 = vmatprep.subr.mxu0 0.0
    %90 = vmatpush1.xpose.msra.mxu0 0.0
    %91 = vmatprep.subr.mxu0 0.0
    %92 = vmatpush1.xpose.msra.mxu0 0.0
    %93 = vmatprep.subr.mxu0 0.0
    %94 = vmatpush1.xpose.msra.mxu0 0.0
    %95 = vmatprep.subr.mxu0 0.0
    %96 = vmatpush1.xpose.msra.mxu0 0.0
    %97 = vmatprep.subr.mxu0 0.0
    %98 = vmatpush1.xpose.msra.mxu0 %v65
    %99 = vmatprep.subr.mxu0 0.0
    %100 = vmatpush2.xpose.msra.mxu0 0.0
    %101 = vmatprep.subr.mxu0 0.0
    %102 = vmatpush2.xpose.msra.mxu0 0.0
    %103 = vmatprep.subr.mxu0 0.0
    %104 = vmatpush2.xpose.msra.mxu0 0.0
    %105 = vmatprep.subr.mxu0 0.0
    %106 = vmatpush2.xpose.msra.mxu0 0.0
    %107 = vmatprep.subr.mxu0 0.0
    %108 = vmatpush2.xpose.msra.mxu0 0.0
    %109 = vmatprep.subr.mxu0 0.0
    %110 = vmatpush2.xpose.msra.mxu0 0.0
    %111 = vmatprep.subr.mxu0 0.0
    %112 = vmatpush2.xpose.msra.mxu0 0.0
    %113 = vmatprep.subr.mxu0 0.0
    %114 = vmatpush2.xpose.msra.mxu0 0.0
    %115 = vmatprep.subr.mxu0 0.0
    %116 = vmatpush2.xpose.msra.mxu0 0.0
    %117 = vmatprep.subr.mxu0 0.0
    %118 = vmatpush2.xpose.msra.mxu0 0.0
    %119 = vmatprep.subr.mxu0 0.0
    %120 = vmatpush2.xpose.msra.mxu0 0.0
    %121 = vmatprep.subr.mxu0 0.0
    %122 = vmatpush2.xpose.msra.mxu0 0.0
    %123 = vmatprep.subr.mxu0 0.0
    %124 = vmatpush2.xpose.msra.mxu0 0.0
    %125 = vmatprep.subr.mxu0 0.0
    %126 = vmatpush2.xpose.msra.mxu0 0.0
    %127 = vmatprep.subr.mxu0 0.0
    %128 = vmatpush2.xpose.msra.mxu0 0.0
    %129 = vmatprep.subr.mxu0 0.0
    %130 = vmatpush2.xpose.msra.mxu0 0.0
    %131 = vmatprep.mubr.f32.mxu0 0.0
    %132 = vmatmul.mubr.f32.gmra.mxu0 %v53
    %v133 = vpop.f32.mrf.mxu0
    %v134 = vadd.f32 %v34, %v133
    %v135 = vpop.f32.mrf.mxu0
    %136 = vmatprep.mubr.f32.mxu0 0.0
    %137 = vmatmul.mubr.f32.gmra.mxu0 %v56
    %v138 = vpop.f32.mrf.mxu0
    %v139 = vadd.f32 %v39, %v138
    %v140 = vpop.f32.mrf.mxu0
    %141 = vmatprep.mubr.f32.mxu0 0.0
    %142 = vmatmul.mubr.f32.gmra.mxu0 %v59
    %v143 = vpop.f32.mrf.mxu0
    %v144 = vadd.f32 %v44, %v143
    %v145 = vpop.f32.mrf.mxu0
    %146 = vmatprep.mubr.f32.mxu0 0.0
    %147 = vmatmul.mubr.f32.gmra.mxu0 %v62
    %v148 = vpop.f32.mrf.mxu0
    %v149 = vadd.f32 %v49, %v148
    %v150 = vpop.f32.mrf.mxu0
    %151 = vdwg.mxu0
    %v152 = vmax.f32 %v134, 0.0
    %v153 = vmax.f32 %v139, 0.0
    %v154 = vmax.f32 %v144, 0.0
    %v155 = vmax.f32 %v149, 0.0
    %v156 = vld [vmem:[%s3] sm:$0xff]
    %v157 = vld [vmem:[%s3 + $0x8] sm:$0xff]
    %v158 = vld [vmem:[%s3 + $0x10] sm:$0xff]
    %v159 = vld [vmem:[%s3 + $0x18] sm:$0xff]
    %161 = vset.pattern.permute.xlu0 0
    %162 = vperm.xlu0 %161, %v156
    %v163 = vpop.permute.xlu0 %162
    %166 = vset.pattern.permute.xlu0 0
    %167 = vperm.xlu0 %166, %v157
    %v168 = vpop.permute.xlu0 %167
    %171 = vset.pattern.permute.xlu0 0
    %172 = vperm.xlu0 %171, %v158
    %v173 = vpop.permute.xlu0 %172
    %176 = vset.pattern.permute.xlu0 0
    %177 = vperm.xlu0 %176, %v159
    %v178 = vpop.permute.xlu0 %177
    %v180 = vmul.f32 %v152, %v163
    %v181 = vmul.f32 %v153, %v168
    %v182 = vmul.f32 %v154, %v173
    %v183 = vmul.f32 %v155, %v178
    %vm184 = vcmask 64512
    %v185 = vsel %vm184, %v180, 0.0
    %v186 = vsel %vm184, %v181, 0.0
    %v187 = vadd.f32 %v185, %v186
    %v188 = vsel %vm184, %v182, 0.0
    %v189 = vadd.f32 %v187, %v188
    %v190 = vsel %vm184, %v183, 0.0
    %v191 = vadd.f32 %v189, %v190
    %v192 = vrot.slane %v191, 4
    %v193 = vadd.f32 %v191, %v192
    %v194 = vrot.slane %v193, 2
    %v195 = vadd.f32 %v193, %v194
    %v196 = vrot.slane %v195, 1
    %v197 = vadd.f32 %v195, %v196
    %s198 = sld [smem:[#allocation2]]
    %v199 = vstv %s198
    %v200 = vadd.f32 %v197, %v199
    %v201 = vsub.f32 0.0, %v200
    %v202 = vmul.f32 %v201, 1.442695
    %v203 = vpow.pop %v202
    %v204 = vadd.f32 %v203, 1.0
    %v205 = vrcp.pop %v204
    %v206 = vmul.f32 1.0, %v205
    %vm207 = vcmask 57344
    %208 = vst.msk [vmem:[#allocation3] sm:$0x1] %vm207, %v206
    // Predicated region
    $region22: #{neuralnet1_forward.1} parent=1 // pred_check
      _
    $region23: #{neuralnet1_forward.1} parent=1 // pred_check_branch
      %210 = sbr.rel (0) target = $region25
    $region24: #{neuralnet1_forward.1} parent=1 // pred_region
      %s212 = ssub.s32 16, 16
      %213 = vsyncadd [#allocation4], %s212
      %s215 = sshll.u32 [#allocation3], 4
      %s216 = int_to_ptr.vmem [resolvable:$true] %s215
      %218 = dma.vmem_to_hbm [thread:$0]  %s216, 16, %s5, [#allocation4]
    $region25: #{neuralnet1_forward.1} parent=1 // pred_fallthru
      _
    // Predicated region
    $region26: #{neuralnet1_forward.1} parent=1 // pred_check
      _
    $region27: #{neuralnet1_forward.1} parent=1 // pred_check_branch
      %220 = sbr.rel (0) target = $region29
    $region28: #{neuralnet1_forward.1} parent=1 // pred_region
      %221 = dma.done [#allocation4], 16
    $region29: #{neuralnet1_forward.1} parent=1 // pred_fallthru
      _
    %222 = vsyncpa [#allocation4], 1

</llo_original>
